<compile_context>
chip_gen: v7x
topology: tpu7x:2x2x1
jax: 0.10.0
libtpu: 0.0.40
codegen_flags: <defaults>
</compile_context>

<pallas_src>
import math
import functools

import jax
import jax.numpy as jnp
import numpy as np
from jax.experimental import pallas as pl
from jax.experimental.pallas import tpu as pltpu


def _pick_group(bh, target=8):
    """Largest divisor of bh that is <= target (heads folded per grid step)."""
    g = max(1, min(int(target), bh))
    while bh % g:
        g -= 1
    return g


# --------------------------------------------------------------------------
# Kernel 1: sparsity measure M = max(Q_K_sample) - sum(Q_K_sample)/L_K
#   Q@K^T on the MXU + masked/weighted reductions; no K_sample materialized.
# --------------------------------------------------------------------------
def _sparsity_kernel(q_ref, k_ref, cnt_ref, m_ref, *, inv_LK):
    # q_ref: (G, L_Q, E) bf16, k_ref: (G, L_K, E) bf16
    # cnt_ref: (L_Q, L_K) f32  -- sample multiplicity, shared across heads
    # m_ref: (1, G, L_Q) f32   -- L_Q on lanes (lane-dense output)
    G = q_ref.shape[0]
    cnt = cnt_ref[...]
    sampled = cnt > 0.0
    for g in range(G):  # static unroll: back-to-back MXU matmuls
        qk = jax.lax.dot_general(
            q_ref[g], k_ref[g], (((1,), (1,)), ((), ())),
            preferred_element_type=jnp.float32)          # (L_Q, L_K)
        s_max = jnp.max(jnp.where(sampled, qk, -jnp.inf), axis=-1)   # (L_Q,)
        s_sum = jnp.sum(qk * cnt, axis=-1)                           # (L_Q,)
        m_ref[0, g, :] = (s_max - s_sum * inv_LK).astype(m_ref.dtype)


def _sparsity_call(q, k, cnt, G):
    BH, L_Q, E = q.shape
    L_K = k.shape[1]
    kernel = functools.partial(_sparsity_kernel, inv_LK=1.0 / float(L_K))
    return pl.pallas_call(
        kernel,
        out_shape=jax.ShapeDtypeStruct((BH // G, G, L_Q), jnp.float32),
        grid_spec=pltpu.PrefetchScalarGridSpec(
            num_scalar_prefetch=0,
            grid=(BH // G,),
            in_specs=[
                pl.BlockSpec((G, L_Q, E), lambda i: (i, 0, 0)),
                pl.BlockSpec((G, L_K, E), lambda i: (i, 0, 0)),
                pl.BlockSpec((L_Q, L_K), lambda i: (0, 0)),   # resident, shared
            ],
            out_specs=pl.BlockSpec((1, G, L_Q), lambda i: (i, 0, 0)),
        ),
        compiler_params=pltpu.CompilerParams(dimension_semantics=("parallel",)),
    )(q, k, cnt)


# --------------------------------------------------------------------------
# Kernel 2: scores_top = Q_top @ K^T, causal ProbMask, softmax, attn @ V,
#           scatter into the (precomputed) cumsum(V) context.
#   G heads per grid step; context packed lane-dense as (L, G*D).
# --------------------------------------------------------------------------
def _context_kernel(idx_ref, qt_ref, k_ref, v_ref, ctx0_ref, out_ref, *, scale):
    # idx_ref : (G, u, 1) int32   (sentinel = L for padded rows)
    # qt_ref  : (G, u, E) bf16    k_ref: (G, L, E) bf16    v_ref: (G, L, D) bf16
    # ctx0_ref/out_ref: (1, L, G*D) f32   (heads adjacent on lanes)
    G, u, _ = qt_ref.shape
    L = k_ref.shape[1]
    D = v_ref.shape[2]

    cols = jax.lax.broadcasted_iota(jnp.int32, (u, L), 1)   # hoisted (shared by heads)
    ones_u = jnp.ones((u, 1), jnp.float32)

    for g in range(G):  # static unroll: keeps MXU fed with back-to-back matmuls
        qt = qt_ref[g]                                   # (u, E) bf16
        k = k_ref[g]                                     # (L, E) bf16
        v = v_ref[g]                                     # (L, D) bf16
        idx_col = idx_ref[g]                             # (u, 1) int32

        # scores_top = Q_reduce @ K^T * scale  (bf16 operands, f32 accumulate)
        scores = jax.lax.dot_general(
            qt, k, (((1,), (1,)), ((), ())),
            preferred_element_type=jnp.float32) * scale   # (u, L)

        # causal ProbMask gathered at the top-k rows: mask where l > index[j]
        scores = jnp.where(cols > idx_col, -jnp.inf, scores)

        # softmax over keys in f32; divide moved to EUP via approx reciprocal
        smax = jnp.max(scores, axis=-1, keepdims=True)
        p = jnp.exp(scores - smax)
        denom = jnp.sum(p, axis=-1, keepdims=True)
        attn = p * pl.reciprocal(denom, approx=True)

        # attn @ V for the selected queries
        out_top = jax.lax.dot_general(
            attn.astype(v.dtype), v, (((1,), (0,)), ((), ())),
            preferred_element_type=jnp.float32)           # (u, D)

        # scatter: context[index[j], :] = out_top[j, :]
        # one-hot matmul scatter (top-k indices are distinct; sentinel==L never hits)
        onehot = (cols == idx_col).astype(jnp.float32)    # (u, L)
        scattered = jax.lax.dot_general(
            onehot, out_top, (((0,), (0,)), ((), ())),
            preferred_element_type=jnp.float32)           # (L, D)
        picked = jax.lax.dot_general(
            onehot, ones_u, (((0,), (0,)), ((), ())),
            preferred_element_type=jnp.float32)           # (L, 1)

        ctx0 = ctx0_ref[0, :, g * D:(g + 1) * D]          # (L, D) f32 cumsum(V)
        out_ref[0, :, g * D:(g + 1) * D] = jnp.where(
            picked > 0.0, scattered, ctx0).astype(out_ref.dtype)


def _context_call(idx, q_top, k, v, ctx0_packed, scale, G):
    BH, u, E = q_top.shape
    L = k.shape[1]
    D = v.shape[2]
    kernel = functools.partial(_context_kernel, scale=scale)
    return pl.pallas_call(
        kernel,
        out_shape=jax.ShapeDtypeStruct((BH // G, L, G * D), jnp.float32),
        grid_spec=pltpu.PrefetchScalarGridSpec(
            num_scalar_prefetch=0,
            grid=(BH // G,),
            in_specs=[
                pl.BlockSpec((G, u, 1), lambda i: (i, 0, 0)),
                pl.BlockSpec((G, u, E), lambda i: (i, 0, 0)),
                pl.BlockSpec((G, L, E), lambda i: (i, 0, 0)),
                pl.BlockSpec((G, L, D), lambda i: (i, 0, 0)),
                pl.BlockSpec((1, L, G * D), lambda i: (i, 0, 0)),
            ],
            out_specs=pl.BlockSpec((1, L, G * D), lambda i: (i, 0, 0)),
        ),
        compiler_params=pltpu.CompilerParams(dimension_semantics=("parallel",)),
    )(idx, q_top, k, v, ctx0_packed)


# --------------------------------------------------------------------------
# Wrapper: ProbAttention.forward (mask_flag=True, output_attention=False)
# --------------------------------------------------------------------------
def prob_attention_forward(queries, keys, values, attn_mask=None, tau=None,
                           delta=None, *, factor=5, scale=None, mask_flag=True,
                           output_attention=False, sample_key=None,
                           group_size=8, compute_dtype=jnp.bfloat16):
    assert mask_flag, "only the default mask_flag=True path is implemented"
    assert attn_mask is None
    # TODO(synk): external attn_mask branch of _update_context and
    # output_attention=True are not implemented; nn.Dropout is defined in
    # __init__ but never applied in the torch forward, so it is omitted here.
    B, L_Q, H, D = queries.shape
    _, L_K, _, _ = keys.shape
    assert L_Q == L_K, "causal ProbMask path assumes self-attention (L_Q == L_K)"
    E = D

    Q = jnp.transpose(queries, (0, 2, 1, 3))   # (B, H, L, D), original dtype
    K = jnp.transpose(keys, (0, 2, 1, 3))
    V = jnp.transpose(values, (0, 2, 1, 3))

    U_part = min(int(factor * math.ceil(math.log(L_K))), L_K)
    u = min(int(factor * math.ceil(math.log(L_Q))), L_Q)

    if sample_key is None:
        sample_key = jax.random.PRNGKey(42)
    # torch.randint(L_K, (L_Q, sample_k)) equivalent (different RNG stream).
    sample_idx = jax.random.randint(sample_key, (L_Q, U_part), 0, L_K)
    # Shared sample multiplicity matrix: cnt[i, j] = #{s : sample_idx[i, s] == j}.
    # Weighted sum reproduces duplicate samples exactly; cnt>0 gives the max mask.
    cnt = jnp.sum(jax.nn.one_hot(sample_idx, L_K, dtype=jnp.float32), axis=1)

    BH = B * H
    G = _pick_group(BH, group_size)            # heads folded per grid step

    q_bf = Q.reshape(BH, L_Q, E).astype(compute_dtype)
    k_bf = K.reshape(BH, L_K, E).astype(compute_dtype)
    v_bf = V.reshape(BH, L_K, D).astype(compute_dtype)

    # --- kernel 1: sparsity measure M (lane-dense: L_Q on lanes) ---
    M = _sparsity_call(q_bf, k_bf, cnt, G).reshape(B, H, L_Q)

    # top-k (sorted=False in torch -> only the index set matters)
    _, index = jax.lax.top_k(M, u)
    index = index.astype(jnp.int32)                       # (B, H, u)

    b_idx = jnp.arange(B)[:, None, None]
    h_idx = jnp.arange(H)[None, :, None]
    Q_reduce = Q[b_idx, h_idx, index].astype(compute_dtype)   # (B, H, u, E)

    # pad u to a multiple of 8; sentinel index L_K masks/scatters nothing
    u_pad = -(-u // 8) * 8
    if u_pad != u:
        pad = u_pad - u
        index = jnp.concatenate(
            [index, jnp.full((B, H, pad), L_K, jnp.int32)], axis=-1)
        Q_reduce = jnp.concatenate(
            [Q_reduce, jnp.zeros((B, H, pad, E), compute_dtype)], axis=-2)

    scale_v = float(scale) if scale is not None else 1.0 / math.sqrt(D)

    # initial context (mask_flag=True): cumsum(V) along keys, f32, computed once
    # in the wrapper and packed lane-dense (heads adjacent on the last axis).
    ctx0 = jnp.cumsum(V.astype(jnp.float32), axis=-2)     # (B, H, L, D)
    ctx0_packed = (ctx0.reshape(BH // G, G, L_K, D)
                       .transpose(0, 2, 1, 3)
                       .reshape(BH // G, L_K, G * D))

    ctx_packed = _context_call(
        index.reshape(BH, u_pad, 1),
        Q_reduce.reshape(BH, u_pad, E),
        k_bf, v_bf, ctx0_packed, scale_v, G)

    context = (ctx_packed.reshape(BH // G, L_K, G, D)
                          .transpose(0, 2, 1, 3)
                          .reshape(B, H, L_K, D))
    # output_attention=False -> attn is None; context stays (B, H, L, D) like torch.
    return context, None


# --------------------------------------------------------------------------
# Pure-JAX reference (same sampling indices, same bf16 matmul operands)
# --------------------------------------------------------------------------
def reference_prob_attention(queries, keys, values, sample_idx, *,
                             factor=5, scale=None, compute_dtype=jnp.bfloat16):
    B, L_Q, H, D = queries.shape
    _, L_K, _, _ = keys.shape
    Q = jnp.transpose(queries, (0, 2, 1, 3))
    K = jnp.transpose(keys, (0, 2, 1, 3))
    V = jnp.transpose(values, (0, 2, 1, 3))
    u = min(int(factor * math.ceil(math.log(L_Q))), L_Q)

    Qc, Kc, Vc = (x.astype(compute_dtype) for x in (Q, K, V))
    K_sample = Kc[:, :, sample_idx, :]                    # (B,H,L_Q,S,E)
    Q_K_sample = jnp.einsum('bhie,bhise->bhis', Qc, K_sample,
                            preferred_element_type=jnp.float32)
    M = Q_K_sample.max(-1) - Q_K_sample.sum(-1) / L_K
    _, index = jax.lax.top_k(M, u)

    b_idx = jnp.arange(B)[:, None, None]
    h_idx = jnp.arange(H)[None, :, None]
    Q_reduce = Qc[b_idx, h_idx, index]
    scale_v = scale if scale is not None else 1.0 / math.sqrt(D)
    scores = jnp.einsum('bhue,bhle->bhul', Q_reduce, Kc,
                        preferred_element_type=jnp.float32) * scale_v

    cols = jnp.arange(L_K)[None, None, None, :]
    scores = jnp.where(cols > index[..., None], -jnp.inf, scores)
    attn = jax.nn.softmax(scores, axis=-1)
    out_top = jnp.einsum('bhul,bhld->bhud', attn.astype(compute_dtype), Vc,
                         preferred_element_type=jnp.float32)

    context = jnp.cumsum(V.astype(jnp.float32), axis=-2)
    context = context.at[b_idx, h_idx, index].set(out_top)
    return context


if __name__ == "__main__":
    key = jax.random.PRNGKey(0)
    kq, kk, kv, ks = jax.random.split(key, 4)
    B, L, H, D = 2, 16, 4, 8
    queries = jax.random.normal(kq, (B, L, H, D), jnp.float32)
    keys_ = jax.random.normal(kk, (B, L, H, D), jnp.float32)
    values = jax.random.normal(kv, (B, L, H, D), jnp.float32)

    context, attn = prob_attention_forward(
        queries, keys_, values, attn_mask=None, sample_key=ks)
    context = jax.block_until_ready(context)

    # sanity check against pure-JAX reference using the same sample indices
    U_part = min(int(5 * math.ceil(math.log(L))), L)
    sample_idx = jax.random.randint(ks, (L, U_part), 0, L)
    ref = reference_prob_attention(queries, keys_, values, sample_idx)
    np.testing.assert_allclose(np.asarray(context), np.asarray(ref),
                               rtol=3e-2, atol=3e-2)
    assert attn is None
    print("KERNEL_OK")
</pallas_src>

<mosaic_0001>
module attributes {stable_mosaic.version = 11 : i64} {
  func.func @_sparsity_kernel(%arg0: i32, %arg1: memref<8x16x8xbf16, #tpu.memory_space<vmem>>, %arg2: memref<8x16x8xbf16, #tpu.memory_space<vmem>>, %arg3: memref<16x16xf32, #tpu.memory_space<vmem>>, %arg4: memref<1x8x16xf32, #tpu.memory_space<vmem>>) attributes {dimension_semantics = [#tpu.dimension_semantics<parallel>], iteration_bounds = array<i64: 1>, scalar_prefetch = 0 : i64, scratch_operands = 0 : i64, tpu.core_type = #tpu.core_type<tc>, window_params = [{transform_indices = @transform_0, window_bounds = array<i64: 8, 16, 8>}, {transform_indices = @transform_1, window_bounds = array<i64: 8, 16, 8>}, {pipeline_mode = #tpu.pipeline_mode<synchronous>, transform_indices = @transform_2, window_bounds = array<i64: 16, 16>}, {transform_indices = @transform_3, window_bounds = array<i64: 1, 8, 16>}]} {
    %c0 = arith.constant 0 : index
    %c0_0 = arith.constant 0 : index
    %0 = vector.load %arg3[%c0, %c0_0] : memref<16x16xf32, #tpu.memory_space<vmem>>, vector<16x16xf32>
    %cst = arith.constant 0.000000e+00 : f32
    %1 = vector.broadcast %cst : f32 to vector<16x16xf32>
    %2 = arith.cmpf ogt, %0, %1 : vector<16x16xf32>
    %c0_1 = arith.constant 0 : index
    %c0_2 = arith.constant 0 : index
    %c0_3 = arith.constant 0 : index
    %3 = vector.load %arg1[%c0_1, %c0_2, %c0_3] : memref<8x16x8xbf16, #tpu.memory_space<vmem>>, vector<1x16x8xbf16>
    %4 = vector.shape_cast %3 : vector<1x16x8xbf16> to vector<16x8xbf16>
    %c0_4 = arith.constant 0 : index
    %c0_5 = arith.constant 0 : index
    %c0_6 = arith.constant 0 : index
    %5 = vector.load %arg2[%c0_4, %c0_5, %c0_6] : memref<8x16x8xbf16, #tpu.memory_space<vmem>>, vector<1x16x8xbf16>
    %6 = vector.shape_cast %5 : vector<1x16x8xbf16> to vector<16x8xbf16>
    %cst_7 = arith.constant dense<0.000000e+00> : vector<16x16xf32>
    %7 = tpu.matmul %4, %6, %cst_7 {dimension_numbers = #tpu.dot_dimension_numbers<[1], [1], [0], [0], [0, 0, 1, 0], [], []>} : vector<16x8xbf16>, vector<16x8xbf16>, vector<16x16xf32> -> vector<16x16xf32>
    %cst_8 = arith.constant 0xFF800000 : f32
    %8 = vector.broadcast %cst_8 : f32 to vector<16x16xf32>
    %9 = arith.select %2, %7, %8 : vector<16x16xi1>, vector<16x16xf32>
    %cst_9 = arith.constant dense<0xFF800000> : vector<16xf32>
    %10 = vector.multi_reduction <maximumf>, %9, %cst_9 [1] : vector<16x16xf32> to vector<16xf32>
    %11 = arith.mulf %7, %0 : vector<16x16xf32>
    %cst_10 = arith.constant dense<0.000000e+00> : vector<16xf32>
    %12 = vector.multi_reduction <add>, %11, %cst_10 [1] : vector<16x16xf32> to vector<16xf32>
    %cst_11 = arith.constant 6.250000e-02 : f32
    %13 = vector.broadcast %cst_11 : f32 to vector<16xf32>
    %14 = arith.mulf %12, %13 : vector<16xf32>
    %15 = arith.subf %10, %14 : vector<16xf32>
    %c0_12 = arith.constant 0 : index
    %c0_13 = arith.constant 0 : index
    %c0_14 = arith.constant 0 : index
    %16 = vector.load %arg4[%c0_12, %c0_13, %c0_14] : memref<1x8x16xf32, #tpu.memory_space<vmem>>, vector<1x1x16xf32>
    %17 = vector.shape_cast %16 : vector<1x1x16xf32> to vector<16xf32>
    %18 = vector.shape_cast %15 : vector<16xf32> to vector<1x1x16xf32>
    tpu.vector_store %arg4[%c0_12, %c0_13, %c0_14], %18 {strides = array<i32>} : memref<1x8x16xf32, #tpu.memory_space<vmem>>, vector<1x1x16xf32>,
    %c1 = arith.constant 1 : index
    %c0_15 = arith.constant 0 : index
    %c0_16 = arith.constant 0 : index
    %19 = vector.load %arg1[%c1, %c0_15, %c0_16] : memref<8x16x8xbf16, #tpu.memory_space<vmem>>, vector<1x16x8xbf16>
    %20 = vector.shape_cast %19 : vector<1x16x8xbf16> to vector<16x8xbf16>
    %c1_17 = arith.constant 1 : index
    %c0_18 = arith.constant 0 : index
    %c0_19 = arith.constant 0 : index
    %21 = vector.load %arg2[%c1_17, %c0_18, %c0_19] : memref<8x16x8xbf16, #tpu.memory_space<vmem>>, vector<1x16x8xbf16>
    %22 = vector.shape_cast %21 : vector<1x16x8xbf16> to vector<16x8xbf16>
    %cst_20 = arith.constant dense<0.000000e+00> : vector<16x16xf32>
    %23 = tpu.matmul %20, %22, %cst_20 {dimension_numbers = #tpu.dot_dimension_numbers<[1], [1], [0], [0], [0, 0, 1, 0], [], []>} : vector<16x8xbf16>, vector<16x8xbf16>, vector<16x16xf32> -> vector<16x16xf32>
    %cst_21 = arith.constant 0xFF800000 : f32
    %24 = vector.broadcast %cst_21 : f32 to vector<16x16xf32>
    %25 = arith.select %2, %23, %24 : vector<16x16xi1>, vector<16x16xf32>
    %cst_22 = arith.constant dense<0xFF800000> : vector<16xf32>
    %26 = vector.multi_reduction <maximumf>, %25, %cst_22 [1] : vector<16x16xf32> to vector<16xf32>
    %27 = arith.mulf %23, %0 : vector<16x16xf32>
    %cst_23 = arith.constant dense<0.000000e+00> : vector<16xf32>
    %28 = vector.multi_reduction <add>, %27, %cst_23 [1] : vector<16x16xf32> to vector<16xf32>
    %cst_24 = arith.constant 6.250000e-02 : f32
    %29 = vector.broadcast %cst_24 : f32 to vector<16xf32>
    %30 = arith.mulf %28, %29 : vector<16xf32>
    %31 = arith.subf %26, %30 : vector<16xf32>
    %c0_25 = arith.constant 0 : index
    %c1_26 = arith.constant 1 : index
    %c0_27 = arith.constant 0 : index
    %32 = vector.load %arg4[%c0_25, %c1_26, %c0_27] : memref<1x8x16xf32, #tpu.memory_space<vmem>>, vector<1x1x16xf32>
    %33 = vector.shape_cast %32 : vector<1x1x16xf32> to vector<16xf32>
    %34 = vector.shape_cast %31 : vector<16xf32> to vector<1x1x16xf32>
    tpu.vector_store %arg4[%c0_25, %c1_26, %c0_27], %34 {strides = array<i32>} : memref<1x8x16xf32, #tpu.memory_space<vmem>>, vector<1x1x16xf32>,
    %c2 = arith.constant 2 : index
    %c0_28 = arith.constant 0 : index
    %c0_29 = arith.constant 0 : index
    %35 = vector.load %arg1[%c2, %c0_28, %c0_29] : memref<8x16x8xbf16, #tpu.memory_space<vmem>>, vector<1x16x8xbf16>
    %36 = vector.shape_cast %35 : vector<1x16x8xbf16> to vector<16x8xbf16>
    %c2_30 = arith.constant 2 : index
    %c0_31 = arith.constant 0 : index
    %c0_32 = arith.constant 0 : index
    %37 = vector.load %arg2[%c2_30, %c0_31, %c0_32] : memref<8x16x8xbf16, #tpu.memory_space<vmem>>, vector<1x16x8xbf16>
    %38 = vector.shape_cast %37 : vector<1x16x8xbf16> to vector<16x8xbf16>
    %cst_33 = arith.constant dense<0.000000e+00> : vector<16x16xf32>
    %39 = tpu.matmul %36, %38, %cst_33 {dimension_numbers = #tpu.dot_dimension_numbers<[1], [1], [0], [0], [0, 0, 1, 0], [], []>} : vector<16x8xbf16>, vector<16x8xbf16>, vector<16x16xf32> -> vector<16x16xf32>
    %cst_34 = arith.constant 0xFF800000 : f32
    %40 = vector.broadcast %cst_34 : f32 to vector<16x16xf32>
    %41 = arith.select %2, %39, %40 : vector<16x16xi1>, vector<16x16xf32>
    %cst_35 = arith.constant dense<0xFF800000> : vector<16xf32>
    %42 = vector.multi_reduction <maximumf>, %41, %cst_35 [1] : vector<16x16xf32> to vector<16xf32>
    %43 = arith.mulf %39, %0 : vector<16x16xf32>
    %cst_36 = arith.constant dense<0.000000e+00> : vector<16xf32>
    %44 = vector.multi_reduction <add>, %43, %cst_36 [1] : vector<16x16xf32> to vector<16xf32>
    %cst_37 = arith.constant 6.250000e-02 : f32
    %45 = vector.broadcast %cst_37 : f32 to vector<16xf32>
    %46 = arith.mulf %44, %45 : vector<16xf32>
    %47 = arith.subf %42, %46 : vector<16xf32>
    %c0_38 = arith.constant 0 : index
    %c2_39 = arith.constant 2 : index
    %c0_40 = arith.constant 0 : index
    %48 = vector.load %arg4[%c0_38, %c2_39, %c0_40] : memref<1x8x16xf32, #tpu.memory_space<vmem>>, vector<1x1x16xf32>
    %49 = vector.shape_cast %48 : vector<1x1x16xf32> to vector<16xf32>
    %50 = vector.shape_cast %47 : vector<16xf32> to vector<1x1x16xf32>
    tpu.vector_store %arg4[%c0_38, %c2_39, %c0_40], %50 {strides = array<i32>} : memref<1x8x16xf32, #tpu.memory_space<vmem>>, vector<1x1x16xf32>,
    %c3 = arith.constant 3 : index
    %c0_41 = arith.constant 0 : index
    %c0_42 = arith.constant 0 : index
    %51 = vector.load %arg1[%c3, %c0_41, %c0_42] : memref<8x16x8xbf16, #tpu.memory_space<vmem>>, vector<1x16x8xbf16>
    %52 = vector.shape_cast %51 : vector<1x16x8xbf16> to vector<16x8xbf16>
    %c3_43 = arith.constant 3 : index
    %c0_44 = arith.constant 0 : index
    %c0_45 = arith.constant 0 : index
    %53 = vector.load %arg2[%c3_43, %c0_44, %c0_45] : memref<8x16x8xbf16, #tpu.memory_space<vmem>>, vector<1x16x8xbf16>
    %54 = vector.shape_cast %53 : vector<1x16x8xbf16> to vector<16x8xbf16>
    %cst_46 = arith.constant dense<0.000000e+00> : vector<16x16xf32>
    %55 = tpu.matmul %52, %54, %cst_46 {dimension_numbers = #tpu.dot_dimension_numbers<[1], [1], [0], [0], [0, 0, 1, 0], [], []>} : vector<16x8xbf16>, vector<16x8xbf16>, vector<16x16xf32> -> vector<16x16xf32>
    %cst_47 = arith.constant 0xFF800000 : f32
    %56 = vector.broadcast %cst_47 : f32 to vector<16x16xf32>
    %57 = arith.select %2, %55, %56 : vector<16x16xi1>, vector<16x16xf32>
    %cst_48 = arith.constant dense<0xFF800000> : vector<16xf32>
    %58 = vector.multi_reduction <maximumf>, %57, %cst_48 [1] : vector<16x16xf32> to vector<16xf32>
    %59 = arith.mulf %55, %0 : vector<16x16xf32>
    %cst_49 = arith.constant dense<0.000000e+00> : vector<16xf32>
    %60 = vector.multi_reduction <add>, %59, %cst_49 [1] : vector<16x16xf32> to vector<16xf32>
    %cst_50 = arith.constant 6.250000e-02 : f32
    %61 = vector.broadcast %cst_50 : f32 to vector<16xf32>
    %62 = arith.mulf %60, %61 : vector<16xf32>
    %63 = arith.subf %58, %62 : vector<16xf32>
    %c0_51 = arith.constant 0 : index
    %c3_52 = arith.constant 3 : index
    %c0_53 = arith.constant 0 : index
    %64 = vector.load %arg4[%c0_51, %c3_52, %c0_53] : memref<1x8x16xf32, #tpu.memory_space<vmem>>, vector<1x1x16xf32>
    %65 = vector.shape_cast %64 : vector<1x1x16xf32> to vector<16xf32>
    %66 = vector.shape_cast %63 : vector<16xf32> to vector<1x1x16xf32>
    tpu.vector_store %arg4[%c0_51, %c3_52, %c0_53], %66 {strides = array<i32>} : memref<1x8x16xf32, #tpu.memory_space<vmem>>, vector<1x1x16xf32>,
    %c4 = arith.constant 4 : index
    %c0_54 = arith.constant 0 : index
    %c0_55 = arith.constant 0 : index
    %67 = vector.load %arg1[%c4, %c0_54, %c0_55] : memref<8x16x8xbf16, #tpu.memory_space<vmem>>, vector<1x16x8xbf16>
    %68 = vector.shape_cast %67 : vector<1x16x8xbf16> to vector<16x8xbf16>
    %c4_56 = arith.constant 4 : index
    %c0_57 = arith.constant 0 : index
    %c0_58 = arith.constant 0 : index
    %69 = vector.load %arg2[%c4_56, %c0_57, %c0_58] : memref<8x16x8xbf16, #tpu.memory_space<vmem>>, vector<1x16x8xbf16>
    %70 = vector.shape_cast %69 : vector<1x16x8xbf16> to vector<16x8xbf16>
    %cst_59 = arith.constant dense<0.000000e+00> : vector<16x16xf32>
    %71 = tpu.matmul %68, %70, %cst_59 {dimension_numbers = #tpu.dot_dimension_numbers<[1], [1], [0], [0], [0, 0, 1, 0], [], []>} : vector<16x8xbf16>, vector<16x8xbf16>, vector<16x16xf32> -> vector<16x16xf32>
    %cst_60 = arith.constant 0xFF800000 : f32
    %72 = vector.broadcast %cst_60 : f32 to vector<16x16xf32>
    %73 = arith.select %2, %71, %72 : vector<16x16xi1>, vector<16x16xf32>
    %cst_61 = arith.constant dense<0xFF800000> : vector<16xf32>
    %74 = vector.multi_reduction <maximumf>, %73, %cst_61 [1] : vector<16x16xf32> to vector<16xf32>
    %75 = arith.mulf %71, %0 : vector<16x16xf32>
    %cst_62 = arith.constant dense<0.000000e+00> : vector<16xf32>
    %76 = vector.multi_reduction <add>, %75, %cst_62 [1] : vector<16x16xf32> to vector<16xf32>
    %cst_63 = arith.constant 6.250000e-02 : f32
    %77 = vector.broadcast %cst_63 : f32 to vector<16xf32>
    %78 = arith.mulf %76, %77 : vector<16xf32>
    %79 = arith.subf %74, %78 : vector<16xf32>
    %c0_64 = arith.constant 0 : index
    %c4_65 = arith.constant 4 : index
    %c0_66 = arith.constant 0 : index
    %80 = vector.load %arg4[%c0_64, %c4_65, %c0_66] : memref<1x8x16xf32, #tpu.memory_space<vmem>>, vector<1x1x16xf32>
    %81 = vector.shape_cast %80 : vector<1x1x16xf32> to vector<16xf32>
    %82 = vector.shape_cast %79 : vector<16xf32> to vector<1x1x16xf32>
    tpu.vector_store %arg4[%c0_64, %c4_65, %c0_66], %82 {strides = array<i32>} : memref<1x8x16xf32, #tpu.memory_space<vmem>>, vector<1x1x16xf32>,
    %c5 = arith.constant 5 : index
    %c0_67 = arith.constant 0 : index
    %c0_68 = arith.constant 0 : index
    %83 = vector.load %arg1[%c5, %c0_67, %c0_68] : memref<8x16x8xbf16, #tpu.memory_space<vmem>>, vector<1x16x8xbf16>
    %84 = vector.shape_cast %83 : vector<1x16x8xbf16> to vector<16x8xbf16>
    %c5_69 = arith.constant 5 : index
    %c0_70 = arith.constant 0 : index
    %c0_71 = arith.constant 0 : index
    %85 = vector.load %arg2[%c5_69, %c0_70, %c0_71] : memref<8x16x8xbf16, #tpu.memory_space<vmem>>, vector<1x16x8xbf16>
    %86 = vector.shape_cast %85 : vector<1x16x8xbf16> to vector<16x8xbf16>
    %cst_72 = arith.constant dense<0.000000e+00> : vector<16x16xf32>
    %87 = tpu.matmul %84, %86, %cst_72 {dimension_numbers = #tpu.dot_dimension_numbers<[1], [1], [0], [0], [0, 0, 1, 0], [], []>} : vector<16x8xbf16>, vector<16x8xbf16>, vector<16x16xf32> -> vector<16x16xf32>
    %cst_73 = arith.constant 0xFF800000 : f32
    %88 = vector.broadcast %cst_73 : f32 to vector<16x16xf32>
    %89 = arith.select %2, %87, %88 : vector<16x16xi1>, vector<16x16xf32>
    %cst_74 = arith.constant dense<0xFF800000> : vector<16xf32>
    %90 = vector.multi_reduction <maximumf>, %89, %cst_74 [1] : vector<16x16xf32> to vector<16xf32>
    %91 = arith.mulf %87, %0 : vector<16x16xf32>
    %cst_75 = arith.constant dense<0.000000e+00> : vector<16xf32>
    %92 = vector.multi_reduction <add>, %91, %cst_75 [1] : vector<16x16xf32> to vector<16xf32>
    %cst_76 = arith.constant 6.250000e-02 : f32
    %93 = vector.broadcast %cst_76 : f32 to vector<16xf32>
    %94 = arith.mulf %92, %93 : vector<16xf32>
    %95 = arith.subf %90, %94 : vector<16xf32>
    %c0_77 = arith.constant 0 : index
    %c5_78 = arith.constant 5 : index
    %c0_79 = arith.constant 0 : index
    %96 = vector.load %arg4[%c0_77, %c5_78, %c0_79] : memref<1x8x16xf32, #tpu.memory_space<vmem>>, vector<1x1x16xf32>
    %97 = vector.shape_cast %96 : vector<1x1x16xf32> to vector<16xf32>
    %98 = vector.shape_cast %95 : vector<16xf32> to vector<1x1x16xf32>
    tpu.vector_store %arg4[%c0_77, %c5_78, %c0_79], %98 {strides = array<i32>} : memref<1x8x16xf32, #tpu.memory_space<vmem>>, vector<1x1x16xf32>,
    %c6 = arith.constant 6 : index
    %c0_80 = arith.constant 0 : index
    %c0_81 = arith.constant 0 : index
    %99 = vector.load %arg1[%c6, %c0_80, %c0_81] : memref<8x16x8xbf16, #tpu.memory_space<vmem>>, vector<1x16x8xbf16>
    %100 = vector.shape_cast %99 : vector<1x16x8xbf16> to vector<16x8xbf16>
    %c6_82 = arith.constant 6 : index
    %c0_83 = arith.constant 0 : index
    %c0_84 = arith.constant 0 : index
    %101 = vector.load %arg2[%c6_82, %c0_83, %c0_84] : memref<8x16x8xbf16, #tpu.memory_space<vmem>>, vector<1x16x8xbf16>
    %102 = vector.shape_cast %101 : vector<1x16x8xbf16> to vector<16x8xbf16>
    %cst_85 = arith.constant dense<0.000000e+00> : vector<16x16xf32>
    %103 = tpu.matmul %100, %102, %cst_85 {dimension_numbers = #tpu.dot_dimension_numbers<[1], [1], [0], [0], [0, 0, 1, 0], [], []>} : vector<16x8xbf16>, vector<16x8xbf16>, vector<16x16xf32> -> vector<16x16xf32>
    %cst_86 = arith.constant 0xFF800000 : f32
    %104 = vector.broadcast %cst_86 : f32 to vector<16x16xf32>
    %105 = arith.select %2, %103, %104 : vector<16x16xi1>, vector<16x16xf32>
    %cst_87 = arith.constant dense<0xFF800000> : vector<16xf32>
    %106 = vector.multi_reduction <maximumf>, %105, %cst_87 [1] : vector<16x16xf32> to vector<16xf32>
    %107 = arith.mulf %103, %0 : vector<16x16xf32>
    %cst_88 = arith.constant dense<0.000000e+00> : vector<16xf32>
    %108 = vector.multi_reduction <add>, %107, %cst_88 [1] : vector<16x16xf32> to vector<16xf32>
    %cst_89 = arith.constant 6.250000e-02 : f32
    %109 = vector.broadcast %cst_89 : f32 to vector<16xf32>
    %110 = arith.mulf %108, %109 : vector<16xf32>
    %111 = arith.subf %106, %110 : vector<16xf32>
    %c0_90 = arith.constant 0 : index
    %c6_91 = arith.constant 6 : index
    %c0_92 = arith.constant 0 : index
    %112 = vector.load %arg4[%c0_90, %c6_91, %c0_92] : memref<1x8x16xf32, #tpu.memory_space<vmem>>, vector<1x1x16xf32>
    %113 = vector.shape_cast %112 : vector<1x1x16xf32> to vector<16xf32>
    %114 = vector.shape_cast %111 : vector<16xf32> to vector<1x1x16xf32>
    tpu.vector_store %arg4[%c0_90, %c6_91, %c0_92], %114 {strides = array<i32>} : memref<1x8x16xf32, #tpu.memory_space<vmem>>, vector<1x1x16xf32>,
    %c7 = arith.constant 7 : index
    %c0_93 = arith.constant 0 : index
    %c0_94 = arith.constant 0 : index
    %115 = vector.load %arg1[%c7, %c0_93, %c0_94] : memref<8x16x8xbf16, #tpu.memory_space<vmem>>, vector<1x16x8xbf16>
    %116 = vector.shape_cast %115 : vector<1x16x8xbf16> to vector<16x8xbf16>
    %c7_95 = arith.constant 7 : index
    %c0_96 = arith.constant 0 : index
    %c0_97 = arith.constant 0 : index
    %117 = vector.load %arg2[%c7_95, %c0_96, %c0_97] : memref<8x16x8xbf16, #tpu.memory_space<vmem>>, vector<1x16x8xbf16>
    %118 = vector.shape_cast %117 : vector<1x16x8xbf16> to vector<16x8xbf16>
    %cst_98 = arith.constant dense<0.000000e+00> : vector<16x16xf32>
    %119 = tpu.matmul %116, %118, %cst_98 {dimension_numbers = #tpu.dot_dimension_numbers<[1], [1], [0], [0], [0, 0, 1, 0], [], []>} : vector<16x8xbf16>, vector<16x8xbf16>, vector<16x16xf32> -> vector<16x16xf32>
    %cst_99 = arith.constant 0xFF800000 : f32
    %120 = vector.broadcast %cst_99 : f32 to vector<16x16xf32>
    %121 = arith.select %2, %119, %120 : vector<16x16xi1>, vector<16x16xf32>
    %cst_100 = arith.constant dense<0xFF800000> : vector<16xf32>
    %122 = vector.multi_reduction <maximumf>, %121, %cst_100 [1] : vector<16x16xf32> to vector<16xf32>
    %123 = arith.mulf %119, %0 : vector<16x16xf32>
    %cst_101 = arith.constant dense<0.000000e+00> : vector<16xf32>
    %124 = vector.multi_reduction <add>, %123, %cst_101 [1] : vector<16x16xf32> to vector<16xf32>
    %cst_102 = arith.constant 6.250000e-02 : f32
    %125 = vector.broadcast %cst_102 : f32 to vector<16xf32>
    %126 = arith.mulf %124, %125 : vector<16xf32>
    %127 = arith.subf %122, %126 : vector<16xf32>
    %c0_103 = arith.constant 0 : index
    %c7_104 = arith.constant 7 : index
    %c0_105 = arith.constant 0 : index
    %128 = vector.load %arg4[%c0_103, %c7_104, %c0_105] : memref<1x8x16xf32, #tpu.memory_space<vmem>>, vector<1x1x16xf32>
    %129 = vector.shape_cast %128 : vector<1x1x16xf32> to vector<16xf32>
    %130 = vector.shape_cast %127 : vector<16xf32> to vector<1x1x16xf32>
    tpu.vector_store %arg4[%c0_103, %c7_104, %c0_105], %130 {strides = array<i32>} : memref<1x8x16xf32, #tpu.memory_space<vmem>>, vector<1x1x16xf32>,
    return
  }
  func.func @transform_0(%arg0: i32) -> (i32, i32, i32) {
    %c0_i32 = arith.constant 0 : i32
    %c0_i32_0 = arith.constant 0 : i32
    %c0_i32_1 = arith.constant 0 : i32
    return %arg0, %c0_i32, %c0_i32_0 : i32, i32, i32
  }
  func.func @transform_1(%arg0: i32) -> (i32, i32, i32) {
    %c0_i32 = arith.constant 0 : i32
    %c0_i32_0 = arith.constant 0 : i32
    %c0_i32_1 = arith.constant 0 : i32
    return %arg0, %c0_i32, %c0_i32_0 : i32, i32, i32
  }
  func.func @transform_2(%arg0: i32) -> (i32, i32) {
    %c0_i32 = arith.constant 0 : i32
    %c0_i32_0 = arith.constant 0 : i32
    %c0_i32_1 = arith.constant 0 : i32
    return %c0_i32, %c0_i32_0 : i32, i32
  }
  func.func @transform_3(%arg0: i32) -> (i32, i32, i32) {
    %c0_i32 = arith.constant 0 : i32
    %c0_i32_0 = arith.constant 0 : i32
    %c0_i32_1 = arith.constant 0 : i32
    return %arg0, %c0_i32, %c0_i32_0 : i32, i32, i32
  }
}

</mosaic_0001>

<llo_original>
// kernel: tpu_custom_call.1
$region0: #{tpu_custom_call.1}
  #allocation0 [shape = 'u32[]', space=smem, size = 0x4, offset = 0x4, fixed_abs, tag = 'smem constant byte address 0x4 - core index']
  #allocation1 [shape = 'u32[144,128]{1,0:T(1,128)}', space=vmem, size = 0x12000, scoped, tag = 'internal scratch']
  %s0 = inlined_call_operand.vmem [shape: bf16[8,16,8], index: 0, kind: input, shape index: {}]
  %s1 = inlined_call_operand.vmem [shape: bf16[8,16,8], index: 1, kind: input, shape index: {}]
  %s2 = inlined_call_operand.vmem [shape: f32[16,16], index: 2, kind: input, shape index: {}]
  %s3 = inlined_call_operand.hbm [shape: f32[1,8,16], index: 3, kind: output, shape index: {}]
  %s4 = sld [smem:[#allocation0]]
  $region22: #{tpu_custom_call.1} parent=0
    _
  %s6 = ssub.s32 1, %s4
  %s7 = scalar_select 0, %s6, %s4
  $region1: #{tpu_custom_call.1} parent=0
    #allocation2 [shape = 'u8[4096]{0}', space=vmem, size = 0x1000, scoped, tag = 'output window, operand 0, single buffered']
    #allocation3 [shape = 's32[1]{0}', space=sflag, size = 0x4, scoped, tag = 'scoped memory for tpu_custom_call.1']
    %8 = vsyncpa [#allocation3], 0
    // Predicated region
    $region2: #{tpu_custom_call.1} parent=1 // pred_check
      _
    $region3: #{tpu_custom_call.1} parent=1 // pred_check_branch
      %10 = sbr.rel (0) target = $region5
    $region4: #{tpu_custom_call.1} parent=1 // pred_region
      _
    $region5: #{tpu_custom_call.1} parent=1 // pred_fallthru
      _
    // Predicated region
    $region6: #{tpu_custom_call.1} parent=1 // pred_check
      _
    $region7: #{tpu_custom_call.1} parent=1 // pred_check_branch
      %12 = sbr.rel (0) target = $region9
    $region8: #{tpu_custom_call.1} parent=1 // pred_region
      _
    $region9: #{tpu_custom_call.1} parent=1 // pred_fallthru
      _
    // Predicated region
    $region10: #{tpu_custom_call.1} parent=1 // pred_check
      _
    $region11: #{tpu_custom_call.1} parent=1 // pred_check_branch
      %14 = sbr.rel (0) target = $region13
    $region12: #{tpu_custom_call.1} parent=1 // pred_region
      _
    $region13: #{tpu_custom_call.1} parent=1 // pred_fallthru
      _
    %v16 = vld [vmem:[%s2] sm:$0xff]
    %v17 = vld [vmem:[%s2 + $0x8] sm:$0xff]
    %vm18 = vcmp.gt.f32.partialorder %v16, 0.0
    %vm19 = vcmp.gt.f32.partialorder %v17, 0.0
    %v20 = vld [vmem:[%s0] sm:$0xf]
    %v21 = vld [vmem:[%s0 + $0x4] sm:$0xf]
    %v22 = vld [vmem:[%s1] sm:$0xf]
    %v23 = vld [vmem:[%s1 + $0x4] sm:$0xf]
    %v26 = vunpack.c.l.b16 %v20
    %v27 = vunpack.c.l.b16 %v21
    %v28 = vpack.c.b16 %v27, %v26
    %v31 = vunpack.c.l.b16 %v22
    %v32 = vunpack.c.l.b16 %v23
    %v33 = vpack.c.b16 %v32, %v31
    %vm34 = vcmask 64512
    %v36 = vsel %vm34, %v28, 0
    %v39 = vsel %vm34, %v33, 0
    %41 = vmatprep.subr.bf16.mxu0 0
    %42 = vmatpush1.bf16.xpose.msra.mxu0 %v39
    %43 = vmatprep.subr.bf16.mxu0 0
    %44 = vmatpush1.bf16.xpose.msra.mxu0 0
    %45 = vmatprep.subr.bf16.mxu0 0
    %46 = vmatpush1.bf16.xpose.msra.mxu0 0
    %47 = vmatprep.subr.bf16.mxu0 0
    %48 = vmatpush1.bf16.xpose.msra.mxu0 0
    %49 = vmatprep.subr.bf16.mxu0 0
    %50 = vmatpush1.bf16.xpose.msra.mxu0 0
    %51 = vmatprep.subr.bf16.mxu0 0
    %52 = vmatpush1.bf16.xpose.msra.mxu0 0
    %53 = vmatprep.subr.bf16.mxu0 0
    %54 = vmatpush1.bf16.xpose.msra.mxu0 0
    %55 = vmatprep.subr.bf16.mxu0 0
    %56 = vmatpush1.bf16.xpose.msra.mxu0 0
    %57 = vmatprep.subr.bf16.mxu0 0
    %58 = vmatpush1.bf16.xpose.msra.mxu0 0
    %59 = vmatprep.subr.bf16.mxu0 0
    %60 = vmatpush1.bf16.xpose.msra.mxu0 0
    %61 = vmatprep.subr.bf16.mxu0 0
    %62 = vmatpush1.bf16.xpose.msra.mxu0 0
    %63 = vmatprep.subr.bf16.mxu0 0
    %64 = vmatpush1.bf16.xpose.msra.mxu0 0
    %65 = vmatprep.subr.bf16.mxu0 0
    %66 = vmatpush1.bf16.xpose.msra.mxu0 0
    %67 = vmatprep.subr.bf16.mxu0 0
    %68 = vmatpush1.bf16.xpose.msra.mxu0 0
    %69 = vmatprep.subr.bf16.mxu0 0
    %70 = vmatpush1.bf16.xpose.msra.mxu0 0
    %71 = vmatprep.subr.bf16.mxu0 0
    %72 = vmatpush1.bf16.xpose.msra.mxu0 0
    %73 = vmatprep.mubr.bf16.mxu0 0
    %74 = vmatmul.mubr.bf16.gmra.mrb[0].mxu0 %v36
    %v75 = vpop.f32.mrb[0].mxu0
    %v76 = vadd.f32 0.0, %v75
    %v77 = vpop.f32.mrb[0].mxu0
    %v78 = vpop.f32.mrb[0].mxu0
    %v79 = vadd.f32 0.0, %v78
    %v80 = vpop.f32.mrb[0].mxu0
    %81 = vdwg.mxu0
    %v82 = vsel %vm18, %v76, -inf
    %v83 = vsel %vm19, %v79, -inf
    %vm84 = vcmask 130048
    %v85 = vsel %vm84, %v82, -inf
    %86 = vmax.xlane.f32.xlu0 %v85
    %v87 = vpop.xlane.xlu0 %86
    %v88 = vsel %vm84, %v83, -inf
    %89 = vmax.xlane.f32.xlu0 %v88
    %v90 = vpop.xlane.xlu0 %89
    %v91 = vmul.f32 %v76, %v16
    %v92 = vmul.f32 %v79, %v17
    %v93 = vsel %vm84, %v91, 0.0
    %94 = vadd.xlane.f32.xlu0 %v93
    %v95 = vpop.xlane.xlu0 %94
    %v96 = vsel %vm84, %v92, 0.0
    %97 = vadd.xlane.f32.xlu0 %v96
    %v98 = vpop.xlane.xlu0 %97
    %v99 = vmul.f32 %v95, 0.0625
    %v100 = vmul.f32 %v98, 0.0625
    %v101 = vsub.f32 %v87, %v99
    %v102 = vsub.f32 %v90, %v100
    %v105 = vlaneseq
    %v106 = vand.u32 %v105, 127
    %v107 = vlaneseq
    %v108 = vshrl.u32 %v107, 7
    %v109 = vsub.s32 %v106, %v108
    %v110 = vrot.slane %v101, %v109
    %v111 = vadd.s32 %v106, 4294967288
    %v112 = vlaneseq
    %v113 = vshrl.u32 %v112, 7
    %v114 = vsub.s32 %v111, %v113
    %v115 = vrot.slane %v102, %v114
    %vm116 = vcmask 130112
    %v117 = vsel %vm116, %v115, %v110
    %vm119 = vcmask 122880
    %120 = vst.msk [vmem:[#allocation2] sm:$0x1] %vm119, %v117
    %s121 = scalar_lea.vmem %s0, 8
    %v122 = vld [vmem:[%s121] sm:$0xf]
    %v123 = vld [vmem:[%s121 + $0x4] sm:$0xf]
    %s124 = scalar_lea.vmem %s1, 8
    %v125 = vld [vmem:[%s124] sm:$0xf]
    %v126 = vld [vmem:[%s124 + $0x4] sm:$0xf]
    %v129 = vunpack.c.l.b16 %v122
    %v130 = vunpack.c.l.b16 %v123
    %v131 = vpack.c.b16 %v130, %v129
    %v134 = vunpack.c.l.b16 %v125
    %v135 = vunpack.c.l.b16 %v126
    %v136 = vpack.c.b16 %v135, %v134
    %v138 = vsel %vm34, %v131, 0
    %v141 = vsel %vm34, %v136, 0
    %143 = vmatprep.subr.bf16.mxu0 0
    %144 = vmatpush1.bf16.xpose.msra.mxu0 %v141
    %145 = vmatprep.subr.bf16.mxu0 0
    %146 = vmatpush1.bf16.xpose.msra.mxu0 0
    %147 = vmatprep.subr.bf16.mxu0 0
    %148 = vmatpush1.bf16.xpose.msra.mxu0 0
    %149 = vmatprep.subr.bf16.mxu0 0
    %150 = vmatpush1.bf16.xpose.msra.mxu0 0
    %151 = vmatprep.subr.bf16.mxu0 0
    %152 = vmatpush1.bf16.xpose.msra.mxu0 0
    %153 = vmatprep.subr.bf16.mxu0 0
    %154 = vmatpush1.bf16.xpose.msra.mxu0 0
    %155 = vmatprep.subr.bf16.mxu0 0
    %156 = vmatpush1.bf16.xpose.msra.mxu0 0
    %157 = vmatprep.subr.bf16.mxu0 0
    %158 = vmatpush1.bf16.xpose.msra.mxu0 0
    %159 = vmatprep.subr.bf16.mxu0 0
    %160 = vmatpush1.bf16.xpose.msra.mxu0 0
    %161 = vmatprep.subr.bf16.mxu0 0
    %162 = vmatpush1.bf16.xpose.msra.mxu0 0
    %163 = vmatprep.subr.bf16.mxu0 0
    %164 = vmatpush1.bf16.xpose.msra.mxu0 0
    %165 = vmatprep.subr.bf16.mxu0 0
    %166 = vmatpush1.bf16.xpose.msra.mxu0 0
    %167 = vmatprep.subr.bf16.mxu0 0
    %168 = vmatpush1.bf16.xpose.msra.mxu0 0
    %169 = vmatprep.subr.bf16.mxu0 0
    %170 = vmatpush1.bf16.xpose.msra.mxu0 0
    %171 = vmatprep.subr.bf16.mxu0 0
    %172 = vmatpush1.bf16.xpose.msra.mxu0 0
    %173 = vmatprep.subr.bf16.mxu0 0
    %174 = vmatpush1.bf16.xpose.msra.mxu0 0
    %175 = vmatprep.mubr.bf16.mxu0 0
    %176 = vmatmul.mubr.bf16.gmra.mrb[0].mxu0 %v138
    %v177 = vpop.f32.mrb[0].mxu0
    %v178 = vadd.f32 0.0, %v177
    %v179 = vpop.f32.mrb[0].mxu0
    %v180 = vpop.f32.mrb[0].mxu0
    %v181 = vadd.f32 0.0, %v180
    %v182 = vpop.f32.mrb[0].mxu0
    %183 = vdwg.mxu0
    %v184 = vsel %vm18, %v178, -inf
    %v185 = vsel %vm19, %v181, -inf
    %v186 = vsel %vm84, %v184, -inf
    %187 = vmax.xlane.f32.xlu0 %v186
    %v188 = vpop.xlane.xlu0 %187
    %v189 = vsel %vm84, %v185, -inf
    %190 = vmax.xlane.f32.xlu0 %v189
    %v191 = vpop.xlane.xlu0 %190
    %v192 = vmul.f32 %v178, %v16
    %v193 = vmul.f32 %v181, %v17
    %v194 = vsel %vm84, %v192, 0.0
    %195 = vadd.xlane.f32.xlu0 %v194
    %v196 = vpop.xlane.xlu0 %195
    %v197 = vsel %vm84, %v193, 0.0
    %198 = vadd.xlane.f32.xlu0 %v197
    %v199 = vpop.xlane.xlu0 %198
    %v200 = vmul.f32 %v196, 0.0625
    %v201 = vmul.f32 %v199, 0.0625
    %v202 = vsub.f32 %v188, %v200
    %v203 = vsub.f32 %v191, %v201
    %v206 = vlaneseq
    %v207 = vshrl.u32 %v206, 7
    %v208 = vsub.s32 %v106, %v207
    %v209 = vrot.slane %v202, %v208
    %v210 = vlaneseq
    %v211 = vshrl.u32 %v210, 7
    %v212 = vsub.s32 %v111, %v211
    %v213 = vrot.slane %v203, %v212
    %v214 = vsel %vm116, %v213, %v209
    %216 = vst.msk [vmem:[#allocation2 + $0x1] sm:$0x1] %vm119, %v214
    %s217 = scalar_lea.vmem %s0, 16
    %v218 = vld [vmem:[%s217] sm:$0xf]
    %v219 = vld [vmem:[%s217 + $0x4] sm:$0xf]
    %s220 = scalar_lea.vmem %s1, 16
    %v221 = vld [vmem:[%s220] sm:$0xf]
    %v222 = vld [vmem:[%s220 + $0x4] sm:$0xf]
    %v225 = vunpack.c.l.b16 %v218
    %v226 = vunpack.c.l.b16 %v219
    %v227 = vpack.c.b16 %v226, %v225
    %v230 = vunpack.c.l.b16 %v221
    %v231 = vunpack.c.l.b16 %v222
    %v232 = vpack.c.b16 %v231, %v230
    %v234 = vsel %vm34, %v227, 0
    %v237 = vsel %vm34, %v232, 0
    %239 = vmatprep.subr.bf16.mxu0 0
    %240 = vmatpush1.bf16.xpose.msra.mxu0 %v237
    %241 = vmatprep.subr.bf16.mxu0 0
    %242 = vmatpush1.bf16.xpose.msra.mxu0 0
    %243 = vmatprep.subr.bf16.mxu0 0
    %244 = vmatpush1.bf16.xpose.msra.mxu0 0
    %245 = vmatprep.subr.bf16.mxu0 0
    %246 = vmatpush1.bf16.xpose.msra.mxu0 0
    %247 = vmatprep.subr.bf16.mxu0 0
    %248 = vmatpush1.bf16.xpose.msra.mxu0 0
    %249 = vmatprep.subr.bf16.mxu0 0
    %250 = vmatpush1.bf16.xpose.msra.mxu0 0
    %251 = vmatprep.subr.bf16.mxu0 0
    %252 = vmatpush1.bf16.xpose.msra.mxu0 0
    %253 = vmatprep.subr.bf16.mxu0 0
    %254 = vmatpush1.bf16.xpose.msra.mxu0 0
    %255 = vmatprep.subr.bf16.mxu0 0
    %256 = vmatpush1.bf16.xpose.msra.mxu0 0
    %257 = vmatprep.subr.bf16.mxu0 0
    %258 = vmatpush1.bf16.xpose.msra.mxu0 0
    %259 = vmatprep.subr.bf16.mxu0 0
    %260 = vmatpush1.bf16.xpose.msra.mxu0 0
    %261 = vmatprep.subr.bf16.mxu0 0
    %262 = vmatpush1.bf16.xpose.msra.mxu0 0
    %263 = vmatprep.subr.bf16.mxu0 0
    %264 = vmatpush1.bf16.xpose.msra.mxu0 0
    %265 = vmatprep.subr.bf16.mxu0 0
    %266 = vmatpush1.bf16.xpose.msra.mxu0 0
    %267 = vmatprep.subr.bf16.mxu0 0
    %268 = vmatpush1.bf16.xpose.msra.mxu0 0
    %269 = vmatprep.subr.bf16.mxu0 0
    %270 = vmatpush1.bf16.xpose.msra.mxu0 0
    %271 = vmatprep.mubr.bf16.mxu0 0
    %272 = vmatmul.mubr.bf16.gmra.mrb[0].mxu0 %v234
    %v273 = vpop.f32.mrb[0].mxu0
    %v274 = vadd.f32 0.0, %v273
    %v275 = vpop.f32.mrb[0].mxu0
    %v276 = vpop.f32.mrb[0].mxu0
    %v277 = vadd.f32 0.0, %v276
    %v278 = vpop.f32.mrb[0].mxu0
    %279 = vdwg.mxu0
    %v280 = vsel %vm18, %v274, -inf
    %v281 = vsel %vm19, %v277, -inf
    %v282 = vsel %vm84, %v280, -inf
    %283 = vmax.xlane.f32.xlu0 %v282
    %v284 = vpop.xlane.xlu0 %283
    %v285 = vsel %vm84, %v281, -inf
    %286 = vmax.xlane.f32.xlu0 %v285
    %v287 = vpop.xlane.xlu0 %286
    %v288 = vmul.f32 %v274, %v16
    %v289 = vmul.f32 %v277, %v17
    %v290 = vsel %vm84, %v288, 0.0
    %291 = vadd.xlane.f32.xlu0 %v290
    %v292 = vpop.xlane.xlu0 %291
    %v293 = vsel %vm84, %v289, 0.0
    %294 = vadd.xlane.f32.xlu0 %v293
    %v295 = vpop.xlane.xlu0 %294
    %v296 = vmul.f32 %v292, 0.0625
    %v297 = vmul.f32 %v295, 0.0625
    %v298 = vsub.f32 %v284, %v296
    %v299 = vsub.f32 %v287, %v297
    %v302 = vlaneseq
    %v303 = vshrl.u32 %v302, 7
    %v304 = vsub.s32 %v106, %v303
    %v305 = vrot.slane %v298, %v304
    %v306 = vlaneseq
    %v307 = vshrl.u32 %v306, 7
    %v308 = vsub.s32 %v111, %v307
    %v309 = vrot.slane %v299, %v308
    %v310 = vsel %vm116, %v309, %v305
    %312 = vst.msk [vmem:[#allocation2 + $0x2] sm:$0x1] %vm119, %v310
    %s313 = scalar_lea.vmem %s0, 24
    %v314 = vld [vmem:[%s313] sm:$0xf]
    %v315 = vld [vmem:[%s313 + $0x4] sm:$0xf]
    %s316 = scalar_lea.vmem %s1, 24
    %v317 = vld [vmem:[%s316] sm:$0xf]
    %v318 = vld [vmem:[%s316 + $0x4] sm:$0xf]
    %v321 = vunpack.c.l.b16 %v314
    %v322 = vunpack.c.l.b16 %v315
    %v323 = vpack.c.b16 %v322, %v321
    %v326 = vunpack.c.l.b16 %v317
    %v327 = vunpack.c.l.b16 %v318
    %v328 = vpack.c.b16 %v327, %v326
    %v330 = vsel %vm34, %v323, 0
    %v333 = vsel %vm34, %v328, 0
    %335 = vmatprep.subr.bf16.mxu0 0
    %336 = vmatpush1.bf16.xpose.msra.mxu0 %v333
    %337 = vmatprep.subr.bf16.mxu0 0
    %338 = vmatpush1.bf16.xpose.msra.mxu0 0
    %339 = vmatprep.subr.bf16.mxu0 0
    %340 = vmatpush1.bf16.xpose.msra.mxu0 0
    %341 = vmatprep.subr.bf16.mxu0 0
    %342 = vmatpush1.bf16.xpose.msra.mxu0 0
    %343 = vmatprep.subr.bf16.mxu0 0
    %344 = vmatpush1.bf16.xpose.msra.mxu0 0
    %345 = vmatprep.subr.bf16.mxu0 0
    %346 = vmatpush1.bf16.xpose.msra.mxu0 0
    %347 = vmatprep.subr.bf16.mxu0 0
    %348 = vmatpush1.bf16.xpose.msra.mxu0 0
    %349 = vmatprep.subr.bf16.mxu0 0
    %350 = vmatpush1.bf16.xpose.msra.mxu0 0
    %351 = vmatprep.subr.bf16.mxu0 0
    %352 = vmatpush1.bf16.xpose.msra.mxu0 0
    %353 = vmatprep.subr.bf16.mxu0 0
    %354 = vmatpush1.bf16.xpose.msra.mxu0 0
    %355 = vmatprep.subr.bf16.mxu0 0
    %356 = vmatpush1.bf16.xpose.msra.mxu0 0
    %357 = vmatprep.subr.bf16.mxu0 0
    %358 = vmatpush1.bf16.xpose.msra.mxu0 0
    %359 = vmatprep.subr.bf16.mxu0 0
    %360 = vmatpush1.bf16.xpose.msra.mxu0 0
    %361 = vmatprep.subr.bf16.mxu0 0
    %362 = vmatpush1.bf16.xpose.msra.mxu0 0
    %363 = vmatprep.subr.bf16.mxu0 0
    %364 = vmatpush1.bf16.xpose.msra.mxu0 0
    %365 = vmatprep.subr.bf16.mxu0 0
    %366 = vmatpush1.bf16.xpose.msra.mxu0 0
    %367 = vmatprep.mubr.bf16.mxu0 0
    %368 = vmatmul.mubr.bf16.gmra.mrb[0].mxu0 %v330
    %v369 = vpop.f32.mrb[0].mxu0
    %v370 = vadd.f32 0.0, %v369
    %v371 = vpop.f32.mrb[0].mxu0
    %v372 = vpop.f32.mrb[0].mxu0
    %v373 = vadd.f32 0.0, %v372
    %v374 = vpop.f32.mrb[0].mxu0
    %375 = vdwg.mxu0
    %v376 = vsel %vm18, %v370, -inf
    %v377 = vsel %vm19, %v373, -inf
    %v378 = vsel %vm84, %v376, -inf
    %379 = vmax.xlane.f32.xlu0 %v378
    %v380 = vpop.xlane.xlu0 %379
    %v381 = vsel %vm84, %v377, -inf
    %382 = vmax.xlane.f32.xlu0 %v381
    %v383 = vpop.xlane.xlu0 %382
    %v384 = vmul.f32 %v370, %v16
    %v385 = vmul.f32 %v373, %v17
    %v386 = vsel %vm84, %v384, 0.0
    %387 = vadd.xlane.f32.xlu0 %v386
    %v388 = vpop.xlane.xlu0 %387
    %v389 = vsel %vm84, %v385, 0.0
    %390 = vadd.xlane.f32.xlu0 %v389
    %v391 = vpop.xlane.xlu0 %390
    %v392 = vmul.f32 %v388, 0.0625
    %v393 = vmul.f32 %v391, 0.0625
    %v394 = vsub.f32 %v380, %v392
    %v395 = vsub.f32 %v383, %v393
    %v398 = vlaneseq
    %v399 = vshrl.u32 %v398, 7
    %v400 = vsub.s32 %v106, %v399
    %v401 = vrot.slane %v394, %v400
    %v402 = vlaneseq
    %v403 = vshrl.u32 %v402, 7
    %v404 = vsub.s32 %v111, %v403
    %v405 = vrot.slane %v395, %v404
    %v406 = vsel %vm116, %v405, %v401
    %408 = vst.msk [vmem:[#allocation2 + $0x3] sm:$0x1] %vm119, %v406
    %s409 = scalar_lea.vmem %s0, 32
    %v410 = vld [vmem:[%s409] sm:$0xf]
    %v411 = vld [vmem:[%s409 + $0x4] sm:$0xf]
    %s412 = scalar_lea.vmem %s1, 32
    %v413 = vld [vmem:[%s412] sm:$0xf]
    %v414 = vld [vmem:[%s412 + $0x4] sm:$0xf]
    %v417 = vunpack.c.l.b16 %v410
    %v418 = vunpack.c.l.b16 %v411
    %v419 = vpack.c.b16 %v418, %v417
    %v422 = vunpack.c.l.b16 %v413
    %v423 = vunpack.c.l.b16 %v414
    %v424 = vpack.c.b16 %v423, %v422
    %v426 = vsel %vm34, %v419, 0
    %v429 = vsel %vm34, %v424, 0
    %431 = vmatprep.subr.bf16.mxu0 0
    %432 = vmatpush1.bf16.xpose.msra.mxu0 %v429
    %433 = vmatprep.subr.bf16.mxu0 0
    %434 = vmatpush1.bf16.xpose.msra.mxu0 0
    %435 = vmatprep.subr.bf16.mxu0 0
    %436 = vmatpush1.bf16.xpose.msra.mxu0 0
    %437 = vmatprep.subr.bf16.mxu0 0
    %438 = vmatpush1.bf16.xpose.msra.mxu0 0
    %439 = vmatprep.subr.bf16.mxu0 0
    %440 = vmatpush1.bf16.xpose.msra.mxu0 0
    %441 = vmatprep.subr.bf16.mxu0 0
    %442 = vmatpush1.bf16.xpose.msra.mxu0 0
    %443 = vmatprep.subr.bf16.mxu0 0
    %444 = vmatpush1.bf16.xpose.msra.mxu0 0
    %445 = vmatprep.subr.bf16.mxu0 0
    %446 = vmatpush1.bf16.xpose.msra.mxu0 0
    %447 = vmatprep.subr.bf16.mxu0 0
    %448 = vmatpush1.bf16.xpose.msra.mxu0 0
    %449 = vmatprep.subr.bf16.mxu0 0
    %450 = vmatpush1.bf16.xpose.msra.mxu0 0
    %451 = vmatprep.subr.bf16.mxu0 0
    %452 = vmatpush1.bf16.xpose.msra.mxu0 0
    %453 = vmatprep.subr.bf16.mxu0 0
    %454 = vmatpush1.bf16.xpose.msra.mxu0 0
    %455 = vmatprep.subr.bf16.mxu0 0
    %456 = vmatpush1.bf16.xpose.msra.mxu0 0
    %457 = vmatprep.subr.bf16.mxu0 0
    %458 = vmatpush1.bf16.xpose.msra.mxu0 0
    %459 = vmatprep.subr.bf16.mxu0 0
    %460 = vmatpush1.bf16.xpose.msra.mxu0 0
    %461 = vmatprep.subr.bf16.mxu0 0
    %462 = vmatpush1.bf16.xpose.msra.mxu0 0
    %463 = vmatprep.mubr.bf16.mxu0 0
    %464 = vmatmul.mubr.bf16.gmra.mrb[0].mxu0 %v426
    %v465 = vpop.f32.mrb[0].mxu0
    %v466 = vadd.f32 0.0, %v465
    %v467 = vpop.f32.mrb[0].mxu0
    %v468 = vpop.f32.mrb[0].mxu0
    %v469 = vadd.f32 0.0, %v468
    %v470 = vpop.f32.mrb[0].mxu0
    %471 = vdwg.mxu0
    %v472 = vsel %vm18, %v466, -inf
    %v473 = vsel %vm19, %v469, -inf
    %v474 = vsel %vm84, %v472, -inf
    %475 = vmax.xlane.f32.xlu0 %v474
    %v476 = vpop.xlane.xlu0 %475
    %v477 = vsel %vm84, %v473, -inf
    %478 = vmax.xlane.f32.xlu0 %v477
    %v479 = vpop.xlane.xlu0 %478
    %v480 = vmul.f32 %v466, %v16
    %v481 = vmul.f32 %v469, %v17
    %v482 = vsel %vm84, %v480, 0.0
    %483 = vadd.xlane.f32.xlu0 %v482
    %v484 = vpop.xlane.xlu0 %483
    %v485 = vsel %vm84, %v481, 0.0
    %486 = vadd.xlane.f32.xlu0 %v485
    %v487 = vpop.xlane.xlu0 %486
    %v488 = vmul.f32 %v484, 0.0625
    %v489 = vmul.f32 %v487, 0.0625
    %v490 = vsub.f32 %v476, %v488
    %v491 = vsub.f32 %v479, %v489
    %v494 = vlaneseq
    %v495 = vshrl.u32 %v494, 7
    %v496 = vsub.s32 %v106, %v495
    %v497 = vrot.slane %v490, %v496
    %v498 = vlaneseq
    %v499 = vshrl.u32 %v498, 7
    %v500 = vsub.s32 %v111, %v499
    %v501 = vrot.slane %v491, %v500
    %v502 = vsel %vm116, %v501, %v497
    %504 = vst.msk [vmem:[#allocation2 + $0x4] sm:$0x1] %vm119, %v502
    %s505 = scalar_lea.vmem %s0, 40
    %v506 = vld [vmem:[%s505] sm:$0xf]
    %v507 = vld [vmem:[%s505 + $0x4] sm:$0xf]
    %s508 = scalar_lea.vmem %s1, 40
    %v509 = vld [vmem:[%s508] sm:$0xf]
    %v510 = vld [vmem:[%s508 + $0x4] sm:$0xf]
    %v513 = vunpack.c.l.b16 %v506
    %v514 = vunpack.c.l.b16 %v507
    %v515 = vpack.c.b16 %v514, %v513
    %v518 = vunpack.c.l.b16 %v509
    %v519 = vunpack.c.l.b16 %v510
    %v520 = vpack.c.b16 %v519, %v518
    %v522 = vsel %vm34, %v515, 0
    %v525 = vsel %vm34, %v520, 0
    %527 = vmatprep.subr.bf16.mxu0 0
    %528 = vmatpush1.bf16.xpose.msra.mxu0 %v525
    %529 = vmatprep.subr.bf16.mxu0 0
    %530 = vmatpush1.bf16.xpose.msra.mxu0 0
    %531 = vmatprep.subr.bf16.mxu0 0
    %532 = vmatpush1.bf16.xpose.msra.mxu0 0
    %533 = vmatprep.subr.bf16.mxu0 0
    %534 = vmatpush1.bf16.xpose.msra.mxu0 0
    %535 = vmatprep.subr.bf16.mxu0 0
    %536 = vmatpush1.bf16.xpose.msra.mxu0 0
    %537 = vmatprep.subr.bf16.mxu0 0
    %538 = vmatpush1.bf16.xpose.msra.mxu0 0
    %539 = vmatprep.subr.bf16.mxu0 0
    %540 = vmatpush1.bf16.xpose.msra.mxu0 0
    %541 = vmatprep.subr.bf16.mxu0 0
    %542 = vmatpush1.bf16.xpose.msra.mxu0 0
    %543 = vmatprep.subr.bf16.mxu0 0
    %544 = vmatpush1.bf16.xpose.msra.mxu0 0
    %545 = vmatprep.subr.bf16.mxu0 0
    %546 = vmatpush1.bf16.xpose.msra.mxu0 0
    %547 = vmatprep.subr.bf16.mxu0 0
    %548 = vmatpush1.bf16.xpose.msra.mxu0 0
    %549 = vmatprep.subr.bf16.mxu0 0
    %550 = vmatpush1.bf16.xpose.msra.mxu0 0
    %551 = vmatprep.subr.bf16.mxu0 0
    %552 = vmatpush1.bf16.xpose.msra.mxu0 0
    %553 = vmatprep.subr.bf16.mxu0 0
    %554 = vmatpush1.bf16.xpose.msra.mxu0 0
    %555 = vmatprep.subr.bf16.mxu0 0
    %556 = vmatpush1.bf16.xpose.msra.mxu0 0
    %557 = vmatprep.subr.bf16.mxu0 0
    %558 = vmatpush1.bf16.xpose.msra.mxu0 0
    %559 = vmatprep.mubr.bf16.mxu0 0
    %560 = vmatmul.mubr.bf16.gmra.mrb[0].mxu0 %v522
    %v561 = vpop.f32.mrb[0].mxu0
    %v562 = vadd.f32 0.0, %v561
    %v563 = vpop.f32.mrb[0].mxu0
    %v564 = vpop.f32.mrb[0].mxu0
    %v565 = vadd.f32 0.0, %v564
    %v566 = vpop.f32.mrb[0].mxu0
    %567 = vdwg.mxu0
    %v568 = vsel %vm18, %v562, -inf
    %v569 = vsel %vm19, %v565, -inf
    %v570 = vsel %vm84, %v568, -inf
    %571 = vmax.xlane.f32.xlu0 %v570
    %v572 = vpop.xlane.xlu0 %571
    %v573 = vsel %vm84, %v569, -inf
    %574 = vmax.xlane.f32.xlu0 %v573
    %v575 = vpop.xlane.xlu0 %574
    %v576 = vmul.f32 %v562, %v16
    %v577 = vmul.f32 %v565, %v17
    %v578 = vsel %vm84, %v576, 0.0
    %579 = vadd.xlane.f32.xlu0 %v578
    %v580 = vpop.xlane.xlu0 %579
    %v581 = vsel %vm84, %v577, 0.0
    %582 = vadd.xlane.f32.xlu0 %v581
    %v583 = vpop.xlane.xlu0 %582
    %v584 = vmul.f32 %v580, 0.0625
    %v585 = vmul.f32 %v583, 0.0625
    %v586 = vsub.f32 %v572, %v584
    %v587 = vsub.f32 %v575, %v585
    %v590 = vlaneseq
    %v591 = vshrl.u32 %v590, 7
    %v592 = vsub.s32 %v106, %v591
    %v593 = vrot.slane %v586, %v592
    %v594 = vlaneseq
    %v595 = vshrl.u32 %v594, 7
    %v596 = vsub.s32 %v111, %v595
    %v597 = vrot.slane %v587, %v596
    %v598 = vsel %vm116, %v597, %v593
    %600 = vst.msk [vmem:[#allocation2 + $0x5] sm:$0x1] %vm119, %v598
    %s601 = scalar_lea.vmem %s0, 48
    %v602 = vld [vmem:[%s601] sm:$0xf]
    %v603 = vld [vmem:[%s601 + $0x4] sm:$0xf]
    %s604 = scalar_lea.vmem %s1, 48
    %v605 = vld [vmem:[%s604] sm:$0xf]
    %v606 = vld [vmem:[%s604 + $0x4] sm:$0xf]
    %v609 = vunpack.c.l.b16 %v602
    %v610 = vunpack.c.l.b16 %v603
    %v611 = vpack.c.b16 %v610, %v609
    %v614 = vunpack.c.l.b16 %v605
    %v615 = vunpack.c.l.b16 %v606
    %v616 = vpack.c.b16 %v615, %v614
    %v618 = vsel %vm34, %v611, 0
    %v621 = vsel %vm34, %v616, 0
    %623 = vmatprep.subr.bf16.mxu0 0
    %624 = vmatpush1.bf16.xpose.msra.mxu0 %v621
    %625 = vmatprep.subr.bf16.mxu0 0
    %626 = vmatpush1.bf16.xpose.msra.mxu0 0
    %627 = vmatprep.subr.bf16.mxu0 0
    %628 = vmatpush1.bf16.xpose.msra.mxu0 0
    %629 = vmatprep.subr.bf16.mxu0 0
    %630 = vmatpush1.bf16.xpose.msra.mxu0 0
    %631 = vmatprep.subr.bf16.mxu0 0
    %632 = vmatpush1.bf16.xpose.msra.mxu0 0
    %633 = vmatprep.subr.bf16.mxu0 0
    %634 = vmatpush1.bf16.xpose.msra.mxu0 0
    %635 = vmatprep.subr.bf16.mxu0 0
    %636 = vmatpush1.bf16.xpose.msra.mxu0 0
    %637 = vmatprep.subr.bf16.mxu0 0
    %638 = vmatpush1.bf16.xpose.msra.mxu0 0
    %639 = vmatprep.subr.bf16.mxu0 0
    %640 = vmatpush1.bf16.xpose.msra.mxu0 0
    %641 = vmatprep.subr.bf16.mxu0 0
    %642 = vmatpush1.bf16.xpose.msra.mxu0 0
    %643 = vmatprep.subr.bf16.mxu0 0
    %644 = vmatpush1.bf16.xpose.msra.mxu0 0
    %645 = vmatprep.subr.bf16.mxu0 0
    %646 = vmatpush1.bf16.xpose.msra.mxu0 0
    %647 = vmatprep.subr.bf16.mxu0 0
    %648 = vmatpush1.bf16.xpose.msra.mxu0 0
    %649 = vmatprep.subr.bf16.mxu0 0
    %650 = vmatpush1.bf16.xpose.msra.mxu0 0
    %651 = vmatprep.subr.bf16.mxu0 0
    %652 = vmatpush1.bf16.xpose.msra.mxu0 0
    %653 = vmatprep.subr.bf16.mxu0 0
    %654 = vmatpush1.bf16.xpose.msra.mxu0 0
    %655 = vmatprep.mubr.bf16.mxu0 0
    %656 = vmatmul.mubr.bf16.gmra.mrb[0].mxu0 %v618
    %v657 = vpop.f32.mrb[0].mxu0
    %v658 = vadd.f32 0.0, %v657
    %v659 = vpop.f32.mrb[0].mxu0
    %v660 = vpop.f32.mrb[0].mxu0
    %v661 = vadd.f32 0.0, %v660
    %v662 = vpop.f32.mrb[0].mxu0
    %663 = vdwg.mxu0
    %v664 = vsel %vm18, %v658, -inf
    %v665 = vsel %vm19, %v661, -inf
    %v666 = vsel %vm84, %v664, -inf
    %667 = vmax.xlane.f32.xlu0 %v666
    %v668 = vpop.xlane.xlu0 %667
    %v669 = vsel %vm84, %v665, -inf
    %670 = vmax.xlane.f32.xlu0 %v669
    %v671 = vpop.xlane.xlu0 %670
    %v672 = vmul.f32 %v658, %v16
    %v673 = vmul.f32 %v661, %v17
    %v674 = vsel %vm84, %v672, 0.0
    %675 = vadd.xlane.f32.xlu0 %v674
    %v676 = vpop.xlane.xlu0 %675
    %v677 = vsel %vm84, %v673, 0.0
    %678 = vadd.xlane.f32.xlu0 %v677
    %v679 = vpop.xlane.xlu0 %678
    %v680 = vmul.f32 %v676, 0.0625
    %v681 = vmul.f32 %v679, 0.0625
    %v682 = vsub.f32 %v668, %v680
    %v683 = vsub.f32 %v671, %v681
    %v686 = vlaneseq
    %v687 = vshrl.u32 %v686, 7
    %v688 = vsub.s32 %v106, %v687
    %v689 = vrot.slane %v682, %v688
    %v690 = vlaneseq
    %v691 = vshrl.u32 %v690, 7
    %v692 = vsub.s32 %v111, %v691
    %v693 = vrot.slane %v683, %v692
    %v694 = vsel %vm116, %v693, %v689
    %696 = vst.msk [vmem:[#allocation2 + $0x6] sm:$0x1] %vm119, %v694
    %s697 = scalar_lea.vmem %s0, 56
    %v698 = vld [vmem:[%s697] sm:$0xf]
    %v699 = vld [vmem:[%s697 + $0x4] sm:$0xf]
    %s700 = scalar_lea.vmem %s1, 56
    %v701 = vld [vmem:[%s700] sm:$0xf]
    %v702 = vld [vmem:[%s700 + $0x4] sm:$0xf]
    %v705 = vunpack.c.l.b16 %v698
    %v706 = vunpack.c.l.b16 %v699
    %v707 = vpack.c.b16 %v706, %v705
    %v710 = vunpack.c.l.b16 %v701
    %v711 = vunpack.c.l.b16 %v702
    %v712 = vpack.c.b16 %v711, %v710
    %v714 = vsel %vm34, %v707, 0
    %v717 = vsel %vm34, %v712, 0
    %719 = vmatprep.subr.bf16.mxu0 0
    %720 = vmatpush1.bf16.xpose.msra.mxu0 %v717
    %721 = vmatprep.subr.bf16.mxu0 0
    %722 = vmatpush1.bf16.xpose.msra.mxu0 0
    %723 = vmatprep.subr.bf16.mxu0 0
    %724 = vmatpush1.bf16.xpose.msra.mxu0 0
    %725 = vmatprep.subr.bf16.mxu0 0
    %726 = vmatpush1.bf16.xpose.msra.mxu0 0
    %727 = vmatprep.subr.bf16.mxu0 0
    %728 = vmatpush1.bf16.xpose.msra.mxu0 0
    %729 = vmatprep.subr.bf16.mxu0 0
    %730 = vmatpush1.bf16.xpose.msra.mxu0 0
    %731 = vmatprep.subr.bf16.mxu0 0
    %732 = vmatpush1.bf16.xpose.msra.mxu0 0
    %733 = vmatprep.subr.bf16.mxu0 0
    %734 = vmatpush1.bf16.xpose.msra.mxu0 0
    %735 = vmatprep.subr.bf16.mxu0 0
    %736 = vmatpush1.bf16.xpose.msra.mxu0 0
    %737 = vmatprep.subr.bf16.mxu0 0
    %738 = vmatpush1.bf16.xpose.msra.mxu0 0
    %739 = vmatprep.subr.bf16.mxu0 0
    %740 = vmatpush1.bf16.xpose.msra.mxu0 0
    %741 = vmatprep.subr.bf16.mxu0 0
    %742 = vmatpush1.bf16.xpose.msra.mxu0 0
    %743 = vmatprep.subr.bf16.mxu0 0
    %744 = vmatpush1.bf16.xpose.msra.mxu0 0
    %745 = vmatprep.subr.bf16.mxu0 0
    %746 = vmatpush1.bf16.xpose.msra.mxu0 0
    %747 = vmatprep.subr.bf16.mxu0 0
    %748 = vmatpush1.bf16.xpose.msra.mxu0 0
    %749 = vmatprep.subr.bf16.mxu0 0
    %750 = vmatpush1.bf16.xpose.msra.mxu0 0
    %751 = vmatprep.mubr.bf16.mxu0 0
    %752 = vmatmul.mubr.bf16.gmra.mrb[0].mxu0 %v714
    %v753 = vpop.f32.mrb[0].mxu0
    %v754 = vadd.f32 0.0, %v753
    %v755 = vpop.f32.mrb[0].mxu0
    %v756 = vpop.f32.mrb[0].mxu0
    %v757 = vadd.f32 0.0, %v756
    %v758 = vpop.f32.mrb[0].mxu0
    %759 = vdwg.mxu0
    %v760 = vsel %vm18, %v754, -inf
    %v761 = vsel %vm19, %v757, -inf
    %v762 = vsel %vm84, %v760, -inf
    %763 = vmax.xlane.f32.xlu0 %v762
    %v764 = vpop.xlane.xlu0 %763
    %v765 = vsel %vm84, %v761, -inf
    %766 = vmax.xlane.f32.xlu0 %v765
    %v767 = vpop.xlane.xlu0 %766
    %v768 = vmul.f32 %v754, %v16
    %v769 = vmul.f32 %v757, %v17
    %v770 = vsel %vm84, %v768, 0.0
    %771 = vadd.xlane.f32.xlu0 %v770
    %v772 = vpop.xlane.xlu0 %771
    %v773 = vsel %vm84, %v769, 0.0
    %774 = vadd.xlane.f32.xlu0 %v773
    %v775 = vpop.xlane.xlu0 %774
    %v776 = vmul.f32 %v772, 0.0625
    %v777 = vmul.f32 %v775, 0.0625
    %v778 = vsub.f32 %v764, %v776
    %v779 = vsub.f32 %v767, %v777
    %v782 = vlaneseq
    %v783 = vshrl.u32 %v782, 7
    %v784 = vsub.s32 %v106, %v783
    %v785 = vrot.slane %v778, %v784
    %v786 = vlaneseq
    %v787 = vshrl.u32 %v786, 7
    %v788 = vsub.s32 %v111, %v787
    %v789 = vrot.slane %v779, %v788
    %v790 = vsel %vm116, %v789, %v785
    %792 = vst.msk [vmem:[#allocation2 + $0x7] sm:$0x1] %vm119, %v790
    // Predicated region
    $region14: #{tpu_custom_call.1} parent=1 // pred_check
      _
    $region15: #{tpu_custom_call.1} parent=1 // pred_check_branch
      %794 = sbr.rel (0) target = $region17
    $region16: #{tpu_custom_call.1} parent=1 // pred_region
      %s796 = ssub.s32 128, 128
      %797 = vsyncadd [#allocation3], %s796
      %s799 = sshll.u32 [#allocation2], 4
      %s800 = int_to_ptr.vmem [resolvable:$true] %s799
      %802 = dma.vmem_to_hbm [thread:$0]  %s800, 128, %s3, [#allocation3]
    $region17: #{tpu_custom_call.1} parent=1 // pred_fallthru
      _
    // Predicated region
    $region18: #{tpu_custom_call.1} parent=1 // pred_check
      _
    $region19: #{tpu_custom_call.1} parent=1 // pred_check_branch
      %804 = sbr.rel (0) target = $region21
    $region20: #{tpu_custom_call.1} parent=1 // pred_region
      %805 = dma.done [#allocation3], 128
    $region21: #{tpu_custom_call.1} parent=1 // pred_fallthru
      _
    %806 = vsyncpa [#allocation3], 1

</llo_original>
